<compile_context>
chip_gen: v7x
topology: tpu7x:2x2x1
jax: 0.10.0
libtpu: 0.0.40
codegen_flags: <defaults>
</compile_context>

<pallas_src>
import math
import functools

import jax
import jax.numpy as jnp
from jax.experimental import pallas as pl
from jax.experimental.pallas import tpu as pltpu


def build_pe_matrix(max_len: int, d_model: int) -> jnp.ndarray:
    """Deterministic sinusoidal PE table, identical to the torch __init__ (even d_model)."""
    pos = jnp.arange(max_len, dtype=jnp.float32)[:, None]                       # (L, 1)
    div = jnp.exp(jnp.arange(0, d_model, 2, dtype=jnp.float32)
                  / d_model * -math.log(10000.0))                               # (D/2,)
    ang = pos * div                                                             # (L, D/2)
    # even columns = sin, odd columns = cos
    pe = jnp.stack([jnp.sin(ang), jnp.cos(ang)], axis=-1).reshape(max_len, d_model)
    return pe.astype(jnp.float32)


def _pe_add_kernel(x_ref, pe_ref, o_ref):
    # x_ref/o_ref: (TR, D) in x.dtype, pe_ref: (TR, D) f32. Add in f32, cast on store.
    o_ref[...] = (x_ref[...].astype(jnp.float32) + pe_ref[...]).astype(o_ref.dtype)


def _pe_add_dropout_kernel(x_ref, pe_ref, bits_ref, o_ref, *, threshold, scale):
    out = x_ref[...].astype(jnp.float32) + pe_ref[...]
    # P(drop) = threshold / 2^32 = p ; inverted dropout scaling folded into one select.
    keep = bits_ref[...] >= jnp.uint32(threshold)
    o_ref[...] = jnp.where(keep, out * jnp.float32(scale), jnp.float32(0.0)).astype(o_ref.dtype)


def _choose_row_tile(R, S, target_rows):
    """Pick a row-tile TR that divides R, is lane/sublane legal, and keeps PE indexing simple.

    Valid candidates:
      * TR = k*S with k | B  (PE is pre-tiled to TR rows, constant block index)
      * TR | S with TR % 8 == 0 (PE block index = r % (S // TR))
    Picks the largest candidate <= target_rows (else the smallest valid one).
    """
    B = R // S
    cands = set()
    for k in range(1, B + 1):
        if B % k == 0:
            tr = k * S
            if tr == R or tr % 8 == 0:
                cands.add(tr)
    tr = 8
    while tr <= S:
        if S % tr == 0:
            cands.add(tr)
        tr += 8
    le = [c for c in cands if c <= target_rows]
    return max(le) if le else min(cands)


def positional_encodings_forward(x, pe_matrix, *, dropout_p=0.1,
                                 training=False, rng_key=None):
    """x: (B, S, D), pe_matrix: (max_len, D) f32. Returns (B, S, D) in x.dtype.

    Note: in training mode the caller must thread a fresh rng_key per step,
    otherwise the same dropout mask is reused.
    """
    B, S, D = x.shape
    assert pe_matrix.shape[0] >= S and pe_matrix.shape[1] == D
    pe = pe_matrix[:S, :].astype(jnp.float32)

    R = B * S
    xf = x.reshape(R, D)                       # free reshape (row-major)

    # ~2 MiB per f32/u32 buffer -> with double-buffered x/out/bits + PE this stays
    # well under v5e's 16 MiB / v7x's 32 MiB scoped VMEM defaults.
    target_rows = max(8, (2 * 1024 * 1024) // (D * 4))
    TR = _choose_row_tile(R, S, target_rows)
    grid = (R // TR,)

    row_spec = pl.BlockSpec((TR, D), lambda r: (r, 0))
    if TR % S == 0:
        # One tile spans >= 1 full sequence: pre-tile PE to TR rows once; constant
        # block index -> the PE tile is DMA'd a single time, never re-fetched.
        pe_arg = jnp.tile(pe, (TR // S, 1)) if TR != S else pe
        pe_spec = pl.BlockSpec((TR, D), lambda r: (0, 0))
    else:
        # TR divides S: PE block index is periodic in the row-block index.
        n_pe_blocks = S // TR
        pe_arg = pe
        pe_spec = pl.BlockSpec((TR, D), lambda r: (r % n_pe_blocks, 0))

    compiler_params = pltpu.CompilerParams(
        dimension_semantics=("parallel",),            # shards the stream over v7x's 2 TCs
        vmem_limit_bytes=32 * 1024 * 1024,
    )

    use_dropout = bool(training) and float(dropout_p) > 0.0
    if use_dropout:
        assert dropout_p < 1.0
        if rng_key is None:
            rng_key = jax.random.PRNGKey(0)
        # TODO(synk): torch's RNG stream is not reproducible here; dropout semantics
        # (P(drop)=p, inverted 1/(1-p) scaling) match, the exact mask does not.
        bits = jax.random.bits(rng_key, (R, D), dtype=jnp.uint32)
        threshold = min(int(round(float(dropout_p) * (2 ** 32))), 2 ** 32 - 1)
        scale = 1.0 / (1.0 - float(dropout_p))
        kernel = functools.partial(_pe_add_dropout_kernel,
                                   threshold=threshold, scale=scale)
        out = pl.pallas_call(
            kernel,
            out_shape=jax.ShapeDtypeStruct((R, D), x.dtype),
            grid_spec=pltpu.PrefetchScalarGridSpec(
                num_scalar_prefetch=0,
                grid=grid,
                in_specs=[row_spec, pe_spec, row_spec],
                out_specs=row_spec,
            ),
            compiler_params=compiler_params,
        )(xf, pe_arg, bits)
    else:
        out = pl.pallas_call(
            _pe_add_kernel,
            out_shape=jax.ShapeDtypeStruct((R, D), x.dtype),
            grid_spec=pltpu.PrefetchScalarGridSpec(
                num_scalar_prefetch=0,
                grid=grid,
                in_specs=[row_spec, pe_spec],
                out_specs=row_spec,
            ),
            compiler_params=compiler_params,
        )(xf, pe_arg)

    return out.reshape(B, S, D)


if __name__ == "__main__":
    d_model = 512
    max_len = 64            # module default is 5000; only the :S slice is ever used
    B, S = 2, 8
    dropout_p = 0.1

    key = jax.random.PRNGKey(0)
    kx, kd = jax.random.split(key)
    x = jax.random.normal(kx, (B, S, d_model), dtype=jnp.float32)
    pe_matrix = build_pe_matrix(max_len, d_model)

    # eval mode (dropout = identity) -> exact check vs reference
    out = positional_encodings_forward(x, pe_matrix, dropout_p=dropout_p,
                                       training=False)
    out = jax.block_until_ready(out)
    ref = x + pe_matrix[None, :S, :]
    assert out.shape == (B, S, d_model)
    assert jnp.allclose(out, ref, atol=1e-6, rtol=1e-6)

    # training mode: dropout bits come from jax.random(kd) and are consumed in-kernel;
    # rebuild the same mask in pure JAX and check bit-exact semantics.
    out_train = positional_encodings_forward(x, pe_matrix, dropout_p=dropout_p,
                                             training=True, rng_key=kd)
    out_train = jax.block_until_ready(out_train)
    bits = jax.random.bits(kd, (B * S, d_model), dtype=jnp.uint32).reshape(B, S, d_model)
    thr = jnp.uint32(min(int(round(dropout_p * (2 ** 32))), 2 ** 32 - 1))
    ref_train = jnp.where(bits >= thr, ref * (1.0 / (1.0 - dropout_p)), 0.0)
    assert jnp.allclose(out_train, ref_train, atol=1e-5, rtol=1e-5)

    print("KERNEL_OK")
</pallas_src>

<mosaic_0001>
module attributes {stable_mosaic.version = 11 : i64} {
  func.func @_pe_add_kernel(%arg0: i32, %arg1: memref<16x512xf32, #tpu.memory_space<vmem>>, %arg2: memref<16x512xf32, #tpu.memory_space<vmem>>, %arg3: memref<16x512xf32, #tpu.memory_space<vmem>>) attributes {dimension_semantics = [#tpu.dimension_semantics<parallel>], iteration_bounds = array<i64: 1>, scalar_prefetch = 0 : i64, scratch_operands = 0 : i64, tpu.core_type = #tpu.core_type<tc>, window_params = [{transform_indices = @transform_0, window_bounds = array<i64: 16, 512>}, {pipeline_mode = #tpu.pipeline_mode<synchronous>, transform_indices = @transform_1, window_bounds = array<i64: 16, 512>}, {transform_indices = @transform_2, window_bounds = array<i64: 16, 512>}]} {
    %c0 = arith.constant 0 : index
    %c0_0 = arith.constant 0 : index
    %0 = vector.load %arg1[%c0, %c0_0] : memref<16x512xf32, #tpu.memory_space<vmem>>, vector<16x512xf32>
    %c0_1 = arith.constant 0 : index
    %c0_2 = arith.constant 0 : index
    %1 = vector.load %arg2[%c0_1, %c0_2] : memref<16x512xf32, #tpu.memory_space<vmem>>, vector<16x512xf32>
    %2 = arith.addf %0, %1 : vector<16x512xf32>
    %c0_3 = arith.constant 0 : index
    %c0_4 = arith.constant 0 : index
    %3 = vector.load %arg3[%c0_3, %c0_4] : memref<16x512xf32, #tpu.memory_space<vmem>>, vector<16x512xf32>
    tpu.vector_store %arg3[%c0_3, %c0_4], %2 {strides = array<i32>} : memref<16x512xf32, #tpu.memory_space<vmem>>, vector<16x512xf32>,
    return
  }
  func.func @transform_0(%arg0: i32) -> (i32, i32) {
    %c0_i32 = arith.constant 0 : i32
    %c0_i32_0 = arith.constant 0 : i32
    return %arg0, %c0_i32 : i32, i32
  }
  func.func @transform_1(%arg0: i32) -> (i32, i32) {
    %c0_i32 = arith.constant 0 : i32
    %c0_i32_0 = arith.constant 0 : i32
    %c0_i32_1 = arith.constant 0 : i32
    return %c0_i32, %c0_i32_0 : i32, i32
  }
  func.func @transform_2(%arg0: i32) -> (i32, i32) {
    %c0_i32 = arith.constant 0 : i32
    %c0_i32_0 = arith.constant 0 : i32
    return %arg0, %c0_i32 : i32, i32
  }
}

</mosaic_0001>

<llo_original>
// kernel: tpu_custom_call.1
$region0: #{tpu_custom_call.1}
  #allocation0 [shape = 'u32[]', space=smem, size = 0x4, offset = 0x4, fixed_abs, tag = 'smem constant byte address 0x4 - core index']
  #allocation1 [shape = 'u32[144,128]{1,0:T(1,128)}', space=vmem, size = 0x12000, scoped, tag = 'internal scratch']
  %s0 = inlined_call_operand.hbm [shape: f32[16,512], index: 0, kind: input, shape index: {}]
  %s1 = inlined_call_operand.hbm [shape: f32[16,512], index: 1, kind: input, shape index: {}]
  %s2 = inlined_call_operand.hbm [shape: f32[16,512], index: 2, kind: output, shape index: {}]
  %s3 = sld [smem:[#allocation0]]
  $region26: #{tpu_custom_call.1} parent=0
    _
  %s5 = ssub.s32 1, %s3
  %s6 = scalar_select 0, %s5, %s3
  $region1: #{tpu_custom_call.1} parent=0
    #allocation2 [shape = 'u8[32768]{0}', space=vmem, size = 0x8000, scoped, tag = 'input window, operand 0, single buffered']
    #allocation3 [shape = 's32[1]{0}', space=sflag, size = 0x4, scoped, tag = 'scoped memory for tpu_custom_call.1']
    #allocation4 [shape = 's32[1]{0}', space=sflag, size = 0x4, scoped, tag = 'scoped memory for tpu_custom_call.1']
    #allocation5 [shape = 'u8[32768]{0}', space=vmem, size = 0x8000, scoped, tag = 'input window, operand 1, single buffered']
    #allocation6 [shape = 's32[1]{0}', space=sflag, size = 0x4, scoped, tag = 'scoped memory for tpu_custom_call.1']
    #allocation7 [shape = 'u8[32768]{0}', space=vmem, size = 0x8000, scoped, tag = 'output window, operand 0, single buffered']
    %7 = vsyncpa [#allocation3], 0
    %8 = vsyncpa [#allocation6], 0
    %9 = vsyncpa [#allocation4], 0
    // Predicated region
    $region2: #{tpu_custom_call.1} parent=1 // pred_check
      _
    $region3: #{tpu_custom_call.1} parent=1 // pred_check_branch
      %11 = sbr.rel (0) target = $region5
    $region4: #{tpu_custom_call.1} parent=1 // pred_region
      %s13 = ssub.s32 1024, 1024
      %14 = vsyncadd [#allocation3], %s13
      %s15 = sshll.u32 [#allocation2], 4
      %s16 = int_to_ptr.vmem [resolvable:$true] %s15
      %21 = dma.hbm_to_vmem [thread:$0]  %s0, 1024, %s16, [#allocation3], 512, 512, 32
    $region5: #{tpu_custom_call.1} parent=1 // pred_fallthru
      _
    // Predicated region
    $region6: #{tpu_custom_call.1} parent=1 // pred_check
      _
    $region7: #{tpu_custom_call.1} parent=1 // pred_check_branch
      %23 = sbr.rel (0) target = $region9
    $region8: #{tpu_custom_call.1} parent=1 // pred_region
      %s25 = ssub.s32 1024, 1024
      %26 = vsyncadd [#allocation6], %s25
      %s27 = sshll.u32 [#allocation5], 4
      %s28 = int_to_ptr.vmem [resolvable:$true] %s27
      %33 = dma.hbm_to_vmem [thread:$0]  %s1, 1024, %s28, [#allocation6], 512, 512, 32
    $region9: #{tpu_custom_call.1} parent=1 // pred_fallthru
      _
    // Predicated region
    $region10: #{tpu_custom_call.1} parent=1 // pred_check
      _
    $region11: #{tpu_custom_call.1} parent=1 // pred_check_branch
      %35 = sbr.rel (0) target = $region13
    $region12: #{tpu_custom_call.1} parent=1 // pred_region
      %36 = dma.done [#allocation3], 1024
    $region13: #{tpu_custom_call.1} parent=1 // pred_fallthru
      _
    // Predicated region
    $region14: #{tpu_custom_call.1} parent=1 // pred_check
      _
    $region15: #{tpu_custom_call.1} parent=1 // pred_check_branch
      %38 = sbr.rel (0) target = $region17
    $region16: #{tpu_custom_call.1} parent=1 // pred_region
      %39 = dma.done [#allocation6], 1024
    $region17: #{tpu_custom_call.1} parent=1 // pred_fallthru
      _
    %v40 = vld [vmem:[#allocation2] sm:$0xff]
    %v41 = vld [vmem:[#allocation2 + $0x8] sm:$0xff]
    %v42 = vld [vmem:[#allocation2 + $0x10] sm:$0xff]
    %v43 = vld [vmem:[#allocation2 + $0x18] sm:$0xff]
    %v44 = vld [vmem:[#allocation2 + $0x20] sm:$0xff]
    %v45 = vld [vmem:[#allocation2 + $0x28] sm:$0xff]
    %v46 = vld [vmem:[#allocation2 + $0x30] sm:$0xff]
    %v47 = vld [vmem:[#allocation2 + $0x38] sm:$0xff]
    %v48 = vld [vmem:[#allocation5] sm:$0xff]
    %v49 = vld [vmem:[#allocation5 + $0x8] sm:$0xff]
    %v50 = vld [vmem:[#allocation5 + $0x10] sm:$0xff]
    %v51 = vld [vmem:[#allocation5 + $0x18] sm:$0xff]
    %v52 = vld [vmem:[#allocation5 + $0x20] sm:$0xff]
    %v53 = vld [vmem:[#allocation5 + $0x28] sm:$0xff]
    %v54 = vld [vmem:[#allocation5 + $0x30] sm:$0xff]
    %v55 = vld [vmem:[#allocation5 + $0x38] sm:$0xff]
    %v56 = vadd.f32 %v40, %v48
    %v57 = vadd.f32 %v41, %v49
    %v58 = vadd.f32 %v42, %v50
    %v59 = vadd.f32 %v43, %v51
    %v60 = vadd.f32 %v44, %v52
    %v61 = vadd.f32 %v45, %v53
    %v62 = vadd.f32 %v46, %v54
    %v63 = vadd.f32 %v47, %v55
    %64 = vst [vmem:[#allocation7] sm:$0xff] %v56
    %65 = vst [vmem:[#allocation7 + $0x8] sm:$0xff] %v57
    %66 = vst [vmem:[#allocation7 + $0x10] sm:$0xff] %v58
    %67 = vst [vmem:[#allocation7 + $0x18] sm:$0xff] %v59
    %68 = vst [vmem:[#allocation7 + $0x20] sm:$0xff] %v60
    %69 = vst [vmem:[#allocation7 + $0x28] sm:$0xff] %v61
    %70 = vst [vmem:[#allocation7 + $0x30] sm:$0xff] %v62
    %71 = vst [vmem:[#allocation7 + $0x38] sm:$0xff] %v63
    // Predicated region
    $region18: #{tpu_custom_call.1} parent=1 // pred_check
      _
    $region19: #{tpu_custom_call.1} parent=1 // pred_check_branch
      %73 = sbr.rel (0) target = $region21
    $region20: #{tpu_custom_call.1} parent=1 // pred_region
      %s75 = ssub.s32 1024, 1024
      %76 = vsyncadd [#allocation4], %s75
      %s77 = sshll.u32 [#allocation7], 4
      %s78 = int_to_ptr.vmem [resolvable:$true] %s77
      %83 = dma.vmem_to_hbm [thread:$0]  %s78, 1024, %s2, [#allocation4], 512, 512, 32
    $region21: #{tpu_custom_call.1} parent=1 // pred_fallthru
      _
    // Predicated region
    $region22: #{tpu_custom_call.1} parent=1 // pred_check
      _
    $region23: #{tpu_custom_call.1} parent=1 // pred_check_branch
      %85 = sbr.rel (0) target = $region25
    $region24: #{tpu_custom_call.1} parent=1 // pred_region
      %86 = dma.done [#allocation4], 1024
    $region25: #{tpu_custom_call.1} parent=1 // pred_fallthru
      _
    %87 = vsyncpa [#allocation3], 1
    %88 = vsyncpa [#allocation6], 1
    %89 = vsyncpa [#allocation4], 1

</llo_original>
